<compile_context>
chip_gen: v6e
topology: v6e:2x2x1
jax: 0.10.0
libtpu: 0.0.40
codegen_flags: <defaults>
</compile_context>

<pallas_src>
import numpy as np
import jax
import jax.numpy as jnp
from jax import lax
from jax.experimental import pallas as pl
from jax.experimental.pallas import tpu as pltpu


def _round_up(x, m):
    return (x + m - 1) // m * m


def _make_kernel(bpg, Cm, O, kh, kw, Wp, Lp, Lq, use_mxu):
    taps = [(i, j) for i in range(kh) for j in range(kw)]

    def kernel(wd_ref, pw_ref, x_ref, out_ref):
        # wd_ref : (kh*kw, bpg*Cm, 1) depthwise tap weights (tiled over batch fold)
        # pw_ref : (O, Cm)            pointwise weights
        # x_ref  : (1, bpg*Cm, Lp)    flattened, zero-padded input (bpg batch elems)
        # out_ref: (1, bpg*O, Lq)     flattened output (Wp-strided rows)
        x = x_ref[0].astype(jnp.float32)        # (bpg*Cm, Lp) — loaded once
        wd = wd_ref[...].astype(jnp.float32)    # (kh*kw, bpg*Cm, 1)

        # ---- depthwise: shifted MACs in flattened space, streaming accumulator
        acc = None
        for t, (i, j) in enumerate(taps):
            d = i * Wp + j                      # flat tap offset
            if d == 0:
                shifted = x[:, :Lq]
            else:
                # circular lane roll on the XLU; the wrapped tail lands at
                # indices >= Lp - d > Lq and is never read.
                shifted = pltpu.roll(x, shift=Lp - d, axis=1)[:, :Lq]
            term = shifted * wd[t]              # (bpg*Cm, 1) broadcast along lanes
            acc = term if acc is None else acc + term

        # ---- pointwise 1x1 conv: per-batch channel mixing ----
        pw = pw_ref[...].astype(jnp.float32)    # (O, Cm)
        outs = []
        for b in range(bpg):
            if use_mxu:
                acc_b = acc[b * Cm:(b + 1) * Cm, :]          # (Cm, Lq)
                out_b = jnp.dot(pw, acc_b, preferred_element_type=jnp.float32)
            else:
                # tiny channel counts: stream Cm rank-1 broadcast FMAs on the VPU.
                out_b = None
                for m in range(Cm):
                    r = b * Cm + m
                    upd = pw[:, m:m + 1] * acc[r:r + 1, :]   # (O, Lq)
                    out_b = upd if out_b is None else out_b + upd
            outs.append(out_b)

        out = outs[0] if bpg == 1 else jnp.concatenate(outs, axis=0)
        out_ref[0] = out.astype(out_ref.dtype)

    return kernel


def depthwise_separable_conv2d(x, dw_weight, pw_weight, kernel_size, depth_multiplier=1):
    """x: (N, C, H, W). dw_weight: (C*dm, 1, kh, kw). pw_weight: (O, C*dm, 1, 1)."""
    N, C, H, W = x.shape
    kh, kw = kernel_size
    dm = depth_multiplier
    Cm = C * dm
    O = pw_weight.shape[0]

    # PyTorch module padding: padding=(0, 0 if kh > kw else max(kh, kw) // 2)
    pad_h = 0
    pad_w = 0 if kh > kw else max(kh, kw) // 2

    Hp, Wp = H + 2 * pad_h, W + 2 * pad_w
    Ho, Wo = Hp - kh + 1, Wp - kw + 1

    # "Wp-strided" flattening: keep row stride Wp for the output too, so a conv
    # tap (i, j) is a pure 1-D shift by i*Wp + j.  Junk columns are sliced off
    # after the kernel.  Lengths rounded up to multiples of 128 (dense lanes).
    d_max = (kh - 1) * Wp + (kw - 1)
    Lq = _round_up(Ho * Wp, 128)                   # lane-dense output length
    Lp = _round_up(max(Hp * Wp, d_max + Lq), 128)  # lane-dense input length

    # Batch fold: pack bpg batch elements into the sublane axis so vregs are
    # full even when Cm < 8.
    bpg = min(N, max(1, 8 // Cm))
    G = -(-N // bpg)                               # batch groups = grid size
    N_pad = G * bpg

    # TODO(synk): at production H/W/C, fold the halo padding + flatten into the
    # kernel via manual DMA instead of materialising a padded HBM copy here.
    xp = jnp.pad(x, ((0, N_pad - N), (0, 0), (pad_h, pad_h), (pad_w, pad_w)))
    if dm > 1:
        # grouped depthwise (groups = C): give each depthwise output channel a
        # 1:1 input row so the kernel stays fully vectorised over Cm.
        xp = jnp.repeat(xp, dm, axis=1)
    xf = xp.reshape(N_pad, Cm, Hp * Wp)
    xf = jnp.pad(xf, ((0, 0), (0, 0), (0, Lp - Hp * Wp)))
    xf = xf.reshape(G, bpg * Cm, Lp)               # HBM metadata reshape only

    # Weight tiles in VMEM (no SMEM scalar reads).
    wd = jnp.transpose(dw_weight.reshape(Cm, kh * kw))        # (kh*kw, Cm)
    wd = jnp.tile(wd, (1, bpg))[:, :, None]                   # (kh*kw, bpg*Cm, 1)
    pw = pw_weight.reshape(O, Cm)                             # (O, Cm)

    # MXU pays off only once the contraction (Cm) and output (O) dims are big
    # enough to fill a meaningful fraction of the systolic array.
    use_mxu = (Cm >= 16) and (O >= 16)
    kernel = _make_kernel(bpg, Cm, O, kh, kw, Wp, Lp, Lq, use_mxu)

    R, Ro = bpg * Cm, bpg * O
    out_flat = pl.pallas_call(
        kernel,
        out_shape=jax.ShapeDtypeStruct((G, Ro, Lq), x.dtype),
        grid=(G,),
        in_specs=[
            pl.BlockSpec((kh * kw, R, 1), lambda g: (0, 0, 0)),  # depthwise weights
            pl.BlockSpec((O, Cm), lambda g: (0, 0)),             # pointwise weights
            pl.BlockSpec((1, R, Lp), lambda g: (g, 0, 0)),       # one batch group
        ],
        out_specs=pl.BlockSpec((1, Ro, Lq), lambda g: (g, 0, 0)),
        compiler_params=pltpu.CompilerParams(
            # Multiple batch groups feed both v7x TensorCores; on single-TC
            # v5e/v6e the per-step overhead (~0.35us) is negligible here.
            dimension_semantics=("parallel",),
        ),
    )(wd, pw, xf)

    # Undo batch fold + Wp-strided flattening: keep only valid rows/cols.
    out = out_flat.reshape(N_pad, O, Lq)[:N]
    out = out[:, :, :Ho * Wp].reshape(N, O, Ho, Wp)[:, :, :, :Wo]
    return out


def _reference(x, dw_weight, pw_weight, kernel_size, depth_multiplier=1):
    """Pure-JAX reference matching nn.Conv2d semantics."""
    C = x.shape[1]
    kh, kw = kernel_size
    pad_h = 0
    pad_w = 0 if kh > kw else max(kh, kw) // 2
    dn = lax.conv_dimension_numbers(x.shape, dw_weight.shape, ('NCHW', 'OIHW', 'NCHW'))
    y = lax.conv_general_dilated(
        x, dw_weight, window_strides=(1, 1),
        padding=((pad_h, pad_h), (pad_w, pad_w)),
        feature_group_count=C, dimension_numbers=dn)
    dn2 = lax.conv_dimension_numbers(y.shape, pw_weight.shape, ('NCHW', 'OIHW', 'NCHW'))
    return lax.conv_general_dilated(
        y, pw_weight, window_strides=(1, 1), padding='VALID', dimension_numbers=dn2)


if __name__ == "__main__":
    key = jax.random.PRNGKey(0)
    k1, k2, k3 = jax.random.split(key, 3)

    N, C, H, W = 2, 4, 16, 16
    out_channels = 8
    kernel_size = (3, 3)
    depth_multiplier = 1
    kh, kw = kernel_size

    x = jax.random.normal(k1, (N, C, H, W), dtype=jnp.float32)
    # Deterministic synthetic weights with the shapes nn.Conv2d would create.
    dw_weight = jax.random.normal(
        k2, (C * depth_multiplier, 1, kh, kw), dtype=jnp.float32) * 0.1
    pw_weight = jax.random.normal(
        k3, (out_channels, C * depth_multiplier, 1, 1), dtype=jnp.float32) * 0.1

    out = depthwise_separable_conv2d(x, dw_weight, pw_weight, kernel_size, depth_multiplier)
    out = jax.block_until_ready(out)

    ref = _reference(x, dw_weight, pw_weight, kernel_size, depth_multiplier)
    ref = jax.block_until_ready(ref)

    assert out.shape == ref.shape, (out.shape, ref.shape)
    assert np.allclose(np.asarray(out), np.asarray(ref), atol=1e-4, rtol=1e-4)

    print("KERNEL_OK")
</pallas_src>

<mosaic_0001>
module attributes {stable_mosaic.version = 11 : i64} {
  func.func @kernel(%arg0: i32, %arg1: memref<9x8x1xf32, #tpu.memory_space<vmem>>, %arg2: memref<8x4xf32, #tpu.memory_space<vmem>>, %arg3: memref<1x8x384xf32, #tpu.memory_space<vmem>>, %arg4: memref<1x16x256xf32, #tpu.memory_space<vmem>>) attributes {dimension_semantics = [#tpu.dimension_semantics<parallel>], iteration_bounds = array<i64: 1>, scalar_prefetch = 0 : i64, scratch_operands = 0 : i64, tpu.core_type = #tpu.core_type<tc>, window_params = [{pipeline_mode = #tpu.pipeline_mode<synchronous>, transform_indices = @transform_0, window_bounds = array<i64: 9, 8, 1>}, {pipeline_mode = #tpu.pipeline_mode<synchronous>, transform_indices = @transform_1, window_bounds = array<i64: 8, 4>}, {transform_indices = @transform_2, window_bounds = array<i64: 1, 8, 384>}, {transform_indices = @transform_3, window_bounds = array<i64: 1, 16, 256>}]} {
    %c0 = arith.constant 0 : index
    %c0_0 = arith.constant 0 : index
    %c0_1 = arith.constant 0 : index
    %0 = vector.load %arg3[%c0, %c0_0, %c0_1] : memref<1x8x384xf32, #tpu.memory_space<vmem>>, vector<1x8x384xf32>
    %1 = vector.shape_cast %0 : vector<1x8x384xf32> to vector<8x384xf32>
    %c0_2 = arith.constant 0 : index
    %c0_3 = arith.constant 0 : index
    %c0_4 = arith.constant 0 : index
    %2 = vector.load %arg1[%c0_2, %c0_3, %c0_4] : memref<9x8x1xf32, #tpu.memory_space<vmem>>, vector<9x8x1xf32>
    %3 = vector.extract_strided_slice %1 {offsets = [0, 0], sizes = [8, 256], strides = [1, 1]} : vector<8x384xf32> to vector<8x256xf32>
    %4 = vector.extract_strided_slice %2 {offsets = [0, 0, 0], sizes = [1, 8, 1], strides = [1, 1, 1]} : vector<9x8x1xf32> to vector<1x8x1xf32>
    %5 = vector.shape_cast %4 : vector<1x8x1xf32> to vector<8x1xf32>
    %6 = vector.broadcast %5 : vector<8x1xf32> to vector<8x256xf32>
    %7 = arith.mulf %3, %6 : vector<8x256xf32>
    %c383_i32 = arith.constant 383 : i32
    %8 = tpu.dynamic_rotate %1 by %c383_i32 dim 1 : vector<8x384xf32>, i32 -> vector<8x384xf32>
    %9 = vector.extract_strided_slice %8 {offsets = [0, 0], sizes = [8, 256], strides = [1, 1]} : vector<8x384xf32> to vector<8x256xf32>
    %10 = vector.extract_strided_slice %2 {offsets = [1, 0, 0], sizes = [1, 8, 1], strides = [1, 1, 1]} : vector<9x8x1xf32> to vector<1x8x1xf32>
    %11 = vector.shape_cast %10 : vector<1x8x1xf32> to vector<8x1xf32>
    %12 = vector.broadcast %11 : vector<8x1xf32> to vector<8x256xf32>
    %13 = arith.mulf %9, %12 : vector<8x256xf32>
    %14 = arith.addf %7, %13 : vector<8x256xf32>
    %c382_i32 = arith.constant 382 : i32
    %15 = tpu.dynamic_rotate %1 by %c382_i32 dim 1 : vector<8x384xf32>, i32 -> vector<8x384xf32>
    %16 = vector.extract_strided_slice %15 {offsets = [0, 0], sizes = [8, 256], strides = [1, 1]} : vector<8x384xf32> to vector<8x256xf32>
    %17 = vector.extract_strided_slice %2 {offsets = [2, 0, 0], sizes = [1, 8, 1], strides = [1, 1, 1]} : vector<9x8x1xf32> to vector<1x8x1xf32>
    %18 = vector.shape_cast %17 : vector<1x8x1xf32> to vector<8x1xf32>
    %19 = vector.broadcast %18 : vector<8x1xf32> to vector<8x256xf32>
    %20 = arith.mulf %16, %19 : vector<8x256xf32>
    %21 = arith.addf %14, %20 : vector<8x256xf32>
    %c366_i32 = arith.constant 366 : i32
    %22 = tpu.dynamic_rotate %1 by %c366_i32 dim 1 : vector<8x384xf32>, i32 -> vector<8x384xf32>
    %23 = vector.extract_strided_slice %22 {offsets = [0, 0], sizes = [8, 256], strides = [1, 1]} : vector<8x384xf32> to vector<8x256xf32>
    %24 = vector.extract_strided_slice %2 {offsets = [3, 0, 0], sizes = [1, 8, 1], strides = [1, 1, 1]} : vector<9x8x1xf32> to vector<1x8x1xf32>
    %25 = vector.shape_cast %24 : vector<1x8x1xf32> to vector<8x1xf32>
    %26 = vector.broadcast %25 : vector<8x1xf32> to vector<8x256xf32>
    %27 = arith.mulf %23, %26 : vector<8x256xf32>
    %28 = arith.addf %21, %27 : vector<8x256xf32>
    %c365_i32 = arith.constant 365 : i32
    %29 = tpu.dynamic_rotate %1 by %c365_i32 dim 1 : vector<8x384xf32>, i32 -> vector<8x384xf32>
    %30 = vector.extract_strided_slice %29 {offsets = [0, 0], sizes = [8, 256], strides = [1, 1]} : vector<8x384xf32> to vector<8x256xf32>
    %31 = vector.extract_strided_slice %2 {offsets = [4, 0, 0], sizes = [1, 8, 1], strides = [1, 1, 1]} : vector<9x8x1xf32> to vector<1x8x1xf32>
    %32 = vector.shape_cast %31 : vector<1x8x1xf32> to vector<8x1xf32>
    %33 = vector.broadcast %32 : vector<8x1xf32> to vector<8x256xf32>
    %34 = arith.mulf %30, %33 : vector<8x256xf32>
    %35 = arith.addf %28, %34 : vector<8x256xf32>
    %c364_i32 = arith.constant 364 : i32
    %36 = tpu.dynamic_rotate %1 by %c364_i32 dim 1 : vector<8x384xf32>, i32 -> vector<8x384xf32>
    %37 = vector.extract_strided_slice %36 {offsets = [0, 0], sizes = [8, 256], strides = [1, 1]} : vector<8x384xf32> to vector<8x256xf32>
    %38 = vector.extract_strided_slice %2 {offsets = [5, 0, 0], sizes = [1, 8, 1], strides = [1, 1, 1]} : vector<9x8x1xf32> to vector<1x8x1xf32>
    %39 = vector.shape_cast %38 : vector<1x8x1xf32> to vector<8x1xf32>
    %40 = vector.broadcast %39 : vector<8x1xf32> to vector<8x256xf32>
    %41 = arith.mulf %37, %40 : vector<8x256xf32>
    %42 = arith.addf %35, %41 : vector<8x256xf32>
    %c348_i32 = arith.constant 348 : i32
    %43 = tpu.dynamic_rotate %1 by %c348_i32 dim 1 : vector<8x384xf32>, i32 -> vector<8x384xf32>
    %44 = vector.extract_strided_slice %43 {offsets = [0, 0], sizes = [8, 256], strides = [1, 1]} : vector<8x384xf32> to vector<8x256xf32>
    %45 = vector.extract_strided_slice %2 {offsets = [6, 0, 0], sizes = [1, 8, 1], strides = [1, 1, 1]} : vector<9x8x1xf32> to vector<1x8x1xf32>
    %46 = vector.shape_cast %45 : vector<1x8x1xf32> to vector<8x1xf32>
    %47 = vector.broadcast %46 : vector<8x1xf32> to vector<8x256xf32>
    %48 = arith.mulf %44, %47 : vector<8x256xf32>
    %49 = arith.addf %42, %48 : vector<8x256xf32>
    %c347_i32 = arith.constant 347 : i32
    %50 = tpu.dynamic_rotate %1 by %c347_i32 dim 1 : vector<8x384xf32>, i32 -> vector<8x384xf32>
    %51 = vector.extract_strided_slice %50 {offsets = [0, 0], sizes = [8, 256], strides = [1, 1]} : vector<8x384xf32> to vector<8x256xf32>
    %52 = vector.extract_strided_slice %2 {offsets = [7, 0, 0], sizes = [1, 8, 1], strides = [1, 1, 1]} : vector<9x8x1xf32> to vector<1x8x1xf32>
    %53 = vector.shape_cast %52 : vector<1x8x1xf32> to vector<8x1xf32>
    %54 = vector.broadcast %53 : vector<8x1xf32> to vector<8x256xf32>
    %55 = arith.mulf %51, %54 : vector<8x256xf32>
    %56 = arith.addf %49, %55 : vector<8x256xf32>
    %c346_i32 = arith.constant 346 : i32
    %57 = tpu.dynamic_rotate %1 by %c346_i32 dim 1 : vector<8x384xf32>, i32 -> vector<8x384xf32>
    %58 = vector.extract_strided_slice %57 {offsets = [0, 0], sizes = [8, 256], strides = [1, 1]} : vector<8x384xf32> to vector<8x256xf32>
    %59 = vector.extract_strided_slice %2 {offsets = [8, 0, 0], sizes = [1, 8, 1], strides = [1, 1, 1]} : vector<9x8x1xf32> to vector<1x8x1xf32>
    %60 = vector.shape_cast %59 : vector<1x8x1xf32> to vector<8x1xf32>
    %61 = vector.broadcast %60 : vector<8x1xf32> to vector<8x256xf32>
    %62 = arith.mulf %58, %61 : vector<8x256xf32>
    %63 = arith.addf %56, %62 : vector<8x256xf32>
    %c0_5 = arith.constant 0 : index
    %c0_6 = arith.constant 0 : index
    %64 = vector.load %arg2[%c0_5, %c0_6] : memref<8x4xf32, #tpu.memory_space<vmem>>, vector<8x4xf32>
    %65 = vector.extract_strided_slice %64 {offsets = [0, 0], sizes = [8, 1], strides = [1, 1]} : vector<8x4xf32> to vector<8x1xf32>
    %66 = vector.extract_strided_slice %63 {offsets = [0, 0], sizes = [1, 256], strides = [1, 1]} : vector<8x256xf32> to vector<1x256xf32>
    %67 = vector.broadcast %65 : vector<8x1xf32> to vector<8x256xf32>
    %68 = vector.broadcast %66 : vector<1x256xf32> to vector<8x256xf32>
    %69 = arith.mulf %67, %68 : vector<8x256xf32>
    %70 = vector.extract_strided_slice %64 {offsets = [0, 1], sizes = [8, 1], strides = [1, 1]} : vector<8x4xf32> to vector<8x1xf32>
    %71 = vector.extract_strided_slice %63 {offsets = [1, 0], sizes = [1, 256], strides = [1, 1]} : vector<8x256xf32> to vector<1x256xf32>
    %72 = vector.broadcast %70 : vector<8x1xf32> to vector<8x256xf32>
    %73 = vector.broadcast %71 : vector<1x256xf32> to vector<8x256xf32>
    %74 = arith.mulf %72, %73 : vector<8x256xf32>
    %75 = arith.addf %69, %74 : vector<8x256xf32>
    %76 = vector.extract_strided_slice %64 {offsets = [0, 2], sizes = [8, 1], strides = [1, 1]} : vector<8x4xf32> to vector<8x1xf32>
    %77 = vector.extract_strided_slice %63 {offsets = [2, 0], sizes = [1, 256], strides = [1, 1]} : vector<8x256xf32> to vector<1x256xf32>
    %78 = vector.broadcast %76 : vector<8x1xf32> to vector<8x256xf32>
    %79 = vector.broadcast %77 : vector<1x256xf32> to vector<8x256xf32>
    %80 = arith.mulf %78, %79 : vector<8x256xf32>
    %81 = arith.addf %75, %80 : vector<8x256xf32>
    %82 = vector.extract_strided_slice %64 {offsets = [0, 3], sizes = [8, 1], strides = [1, 1]} : vector<8x4xf32> to vector<8x1xf32>
    %83 = vector.extract_strided_slice %63 {offsets = [3, 0], sizes = [1, 256], strides = [1, 1]} : vector<8x256xf32> to vector<1x256xf32>
    %84 = vector.broadcast %82 : vector<8x1xf32> to vector<8x256xf32>
    %85 = vector.broadcast %83 : vector<1x256xf32> to vector<8x256xf32>
    %86 = arith.mulf %84, %85 : vector<8x256xf32>
    %87 = arith.addf %81, %86 : vector<8x256xf32>
    %88 = vector.extract_strided_slice %64 {offsets = [0, 0], sizes = [8, 1], strides = [1, 1]} : vector<8x4xf32> to vector<8x1xf32>
    %89 = vector.extract_strided_slice %63 {offsets = [4, 0], sizes = [1, 256], strides = [1, 1]} : vector<8x256xf32> to vector<1x256xf32>
    %90 = vector.broadcast %88 : vector<8x1xf32> to vector<8x256xf32>
    %91 = vector.broadcast %89 : vector<1x256xf32> to vector<8x256xf32>
    %92 = arith.mulf %90, %91 : vector<8x256xf32>
    %93 = vector.extract_strided_slice %64 {offsets = [0, 1], sizes = [8, 1], strides = [1, 1]} : vector<8x4xf32> to vector<8x1xf32>
    %94 = vector.extract_strided_slice %63 {offsets = [5, 0], sizes = [1, 256], strides = [1, 1]} : vector<8x256xf32> to vector<1x256xf32>
    %95 = vector.broadcast %93 : vector<8x1xf32> to vector<8x256xf32>
    %96 = vector.broadcast %94 : vector<1x256xf32> to vector<8x256xf32>
    %97 = arith.mulf %95, %96 : vector<8x256xf32>
    %98 = arith.addf %92, %97 : vector<8x256xf32>
    %99 = vector.extract_strided_slice %64 {offsets = [0, 2], sizes = [8, 1], strides = [1, 1]} : vector<8x4xf32> to vector<8x1xf32>
    %100 = vector.extract_strided_slice %63 {offsets = [6, 0], sizes = [1, 256], strides = [1, 1]} : vector<8x256xf32> to vector<1x256xf32>
    %101 = vector.broadcast %99 : vector<8x1xf32> to vector<8x256xf32>
    %102 = vector.broadcast %100 : vector<1x256xf32> to vector<8x256xf32>
    %103 = arith.mulf %101, %102 : vector<8x256xf32>
    %104 = arith.addf %98, %103 : vector<8x256xf32>
    %105 = vector.extract_strided_slice %64 {offsets = [0, 3], sizes = [8, 1], strides = [1, 1]} : vector<8x4xf32> to vector<8x1xf32>
    %106 = vector.extract_strided_slice %63 {offsets = [7, 0], sizes = [1, 256], strides = [1, 1]} : vector<8x256xf32> to vector<1x256xf32>
    %107 = vector.broadcast %105 : vector<8x1xf32> to vector<8x256xf32>
    %108 = vector.broadcast %106 : vector<1x256xf32> to vector<8x256xf32>
    %109 = arith.mulf %107, %108 : vector<8x256xf32>
    %110 = arith.addf %104, %109 : vector<8x256xf32>
    %111 = tpu.concatenate %87, %110 in 0 : vector<8x256xf32>, vector<8x256xf32> -> vector<16x256xf32>
    %c0_7 = arith.constant 0 : index
    %c0_8 = arith.constant 0 : index
    %c0_9 = arith.constant 0 : index
    %112 = vector.load %arg4[%c0_7, %c0_8, %c0_9] : memref<1x16x256xf32, #tpu.memory_space<vmem>>, vector<1x16x256xf32>
    %113 = vector.shape_cast %112 : vector<1x16x256xf32> to vector<16x256xf32>
    %114 = vector.shape_cast %111 : vector<16x256xf32> to vector<1x16x256xf32>
    tpu.vector_store %arg4[%c0_7, %c0_8, %c0_9], %114 {strides = array<i32>} : memref<1x16x256xf32, #tpu.memory_space<vmem>>, vector<1x16x256xf32>,
    return
  }
  func.func @transform_0(%arg0: i32) -> (i32, i32, i32) {
    %c0_i32 = arith.constant 0 : i32
    %c0_i32_0 = arith.constant 0 : i32
    %c0_i32_1 = arith.constant 0 : i32
    %c0_i32_2 = arith.constant 0 : i32
    return %c0_i32, %c0_i32_0, %c0_i32_1 : i32, i32, i32
  }
  func.func @transform_1(%arg0: i32) -> (i32, i32) {
    %c0_i32 = arith.constant 0 : i32
    %c0_i32_0 = arith.constant 0 : i32
    %c0_i32_1 = arith.constant 0 : i32
    return %c0_i32, %c0_i32_0 : i32, i32
  }
  func.func @transform_2(%arg0: i32) -> (i32, i32, i32) {
    %c0_i32 = arith.constant 0 : i32
    %c0_i32_0 = arith.constant 0 : i32
    %c0_i32_1 = arith.constant 0 : i32
    return %arg0, %c0_i32, %c0_i32_0 : i32, i32, i32
  }
  func.func @transform_3(%arg0: i32) -> (i32, i32, i32) {
    %c0_i32 = arith.constant 0 : i32
    %c0_i32_0 = arith.constant 0 : i32
    %c0_i32_1 = arith.constant 0 : i32
    return %arg0, %c0_i32, %c0_i32_0 : i32, i32, i32
  }
}

</mosaic_0001>

<llo_original>
// kernel: tpu_custom_call.1
$region0: #{tpu_custom_call.1}
  #allocation0 [shape = 'u32[]', space=smem, size = 0x4, offset = 0x4, fixed_abs, tag = 'smem constant byte address 0x4 - core index']
  #allocation1 [shape = 'u32[144,128]{1,0:T(1,128)}', space=vmem, size = 0x12000, scoped, tag = 'internal scratch']
  %s0 = inlined_call_operand.vmem [shape: f32[9,8,1], index: 0, kind: input, shape index: {}]
  %s1 = inlined_call_operand.vmem [shape: f32[8,4], index: 1, kind: input, shape index: {}]
  %s2 = inlined_call_operand.vmem [shape: f32[1,8,384], index: 2, kind: input, shape index: {}]
  %s3 = inlined_call_operand.hbm [shape: f32[1,16,256], index: 3, kind: output, shape index: {}]
  %s4 = sld [smem:[#allocation0]]
  $region22: #{tpu_custom_call.1} parent=0
    _
  %s6 = ssub.s32 1, %s4
  %s7 = scalar_select 0, %s6, %s4
  $region1: #{tpu_custom_call.1} parent=0
    #allocation2 [shape = 'u8[16384]{0}', space=vmem, size = 0x4000, scoped, tag = 'output window, operand 0, single buffered']
    #allocation3 [shape = 's32[1]{0}', space=sflag, size = 0x4, scoped, tag = 'scoped memory for tpu_custom_call.1']
    %8 = vsyncpa [#allocation3], 0
    // Predicated region
    $region2: #{tpu_custom_call.1} parent=1 // pred_check
      _
    $region3: #{tpu_custom_call.1} parent=1 // pred_check_branch
      %10 = sbr.rel (0) target = $region5
    $region4: #{tpu_custom_call.1} parent=1 // pred_region
      _
    $region5: #{tpu_custom_call.1} parent=1 // pred_fallthru
      _
    // Predicated region
    $region6: #{tpu_custom_call.1} parent=1 // pred_check
      _
    $region7: #{tpu_custom_call.1} parent=1 // pred_check_branch
      %12 = sbr.rel (0) target = $region9
    $region8: #{tpu_custom_call.1} parent=1 // pred_region
      _
    $region9: #{tpu_custom_call.1} parent=1 // pred_fallthru
      _
    // Predicated region
    $region10: #{tpu_custom_call.1} parent=1 // pred_check
      _
    $region11: #{tpu_custom_call.1} parent=1 // pred_check_branch
      %14 = sbr.rel (0) target = $region13
    $region12: #{tpu_custom_call.1} parent=1 // pred_region
      _
    $region13: #{tpu_custom_call.1} parent=1 // pred_fallthru
      _
    %v15 = vld [vmem:[%s2] sm:$0xff]
    %v16 = vld [vmem:[%s2 + $0x8] sm:$0xff]
    %v17 = vld [vmem:[%s2 + $0x10] sm:$0xff]
    %v18 = vld [vmem:[%s0] sm:$0xff]
    %v19 = vld [vmem:[%s0 + $0x8] sm:$0xff]
    %v20 = vld [vmem:[%s0 + $0x10] sm:$0xff]
    %v21 = vld [vmem:[%s0 + $0x18] sm:$0xff]
    %v22 = vld [vmem:[%s0 + $0x20] sm:$0xff]
    %v23 = vld [vmem:[%s0 + $0x28] sm:$0xff]
    %v24 = vld [vmem:[%s0 + $0x30] sm:$0xff]
    %v25 = vld [vmem:[%s0 + $0x38] sm:$0xff]
    %v26 = vld [vmem:[%s0 + $0x40] sm:$0xff]
    %28 = vset.pattern.permute.xlu0 0
    %29 = vperm.xlu0 %28, %v18
    %v30 = vpop.permute.xlu0 %29
    %v32 = vmul.f32 %v15, %v30
    %v33 = vmul.f32 %v16, %v30
    %34 = vrot.lane.b32.xlu0 %v15, 127
    %v35 = vpop.permute.xlu0 %34
    %36 = vrot.lane.b32.xlu0 %v16, 127
    %v37 = vpop.permute.xlu0 %36
    %38 = vrot.lane.b32.xlu0 %v17, 127
    %v39 = vpop.permute.xlu0 %38
    %v40 = vlaneseq
    %v41 = vand.u32 %v40, 127
    %vm42 = vcmp.lt.s32.totalorder %v41, 127
    %v43 = vsel %vm42, %v37, %v39
    %v44 = vsel %vm42, %v35, %v37
    %46 = vset.pattern.permute.xlu0 0
    %47 = vperm.xlu0 %46, %v19
    %v48 = vpop.permute.xlu0 %47
    %v50 = vmul.f32 %v44, %v48
    %v51 = vmul.f32 %v43, %v48
    %v52 = vadd.f32 %v32, %v50
    %v53 = vadd.f32 %v33, %v51
    %54 = vrot.lane.b32.xlu0 %v15, 126
    %v55 = vpop.permute.xlu0 %54
    %56 = vrot.lane.b32.xlu0 %v16, 126
    %v57 = vpop.permute.xlu0 %56
    %58 = vrot.lane.b32.xlu0 %v17, 126
    %v59 = vpop.permute.xlu0 %58
    %vm60 = vcmp.lt.s32.totalorder %v41, 126
    %v61 = vsel %vm60, %v57, %v59
    %v62 = vsel %vm60, %v55, %v57
    %64 = vset.pattern.permute.xlu0 0
    %65 = vperm.xlu0 %64, %v20
    %v66 = vpop.permute.xlu0 %65
    %v68 = vmul.f32 %v62, %v66
    %v69 = vmul.f32 %v61, %v66
    %v70 = vadd.f32 %v52, %v68
    %v71 = vadd.f32 %v53, %v69
    %72 = vrot.lane.b32.xlu0 %v15, 110
    %v73 = vpop.permute.xlu0 %72
    %74 = vrot.lane.b32.xlu0 %v16, 110
    %v75 = vpop.permute.xlu0 %74
    %76 = vrot.lane.b32.xlu0 %v17, 110
    %v77 = vpop.permute.xlu0 %76
    %vm78 = vcmp.lt.s32.totalorder %v41, 110
    %v79 = vsel %vm78, %v75, %v77
    %v80 = vsel %vm78, %v73, %v75
    %82 = vset.pattern.permute.xlu0 0
    %83 = vperm.xlu0 %82, %v21
    %v84 = vpop.permute.xlu0 %83
    %v86 = vmul.f32 %v80, %v84
    %v87 = vmul.f32 %v79, %v84
    %v88 = vadd.f32 %v70, %v86
    %v89 = vadd.f32 %v71, %v87
    %90 = vrot.lane.b32.xlu0 %v15, 109
    %v91 = vpop.permute.xlu0 %90
    %92 = vrot.lane.b32.xlu0 %v16, 109
    %v93 = vpop.permute.xlu0 %92
    %94 = vrot.lane.b32.xlu0 %v17, 109
    %v95 = vpop.permute.xlu0 %94
    %vm96 = vcmp.lt.s32.totalorder %v41, 109
    %v97 = vsel %vm96, %v93, %v95
    %v98 = vsel %vm96, %v91, %v93
    %100 = vset.pattern.permute.xlu0 0
    %101 = vperm.xlu0 %100, %v22
    %v102 = vpop.permute.xlu0 %101
    %v104 = vmul.f32 %v98, %v102
    %v105 = vmul.f32 %v97, %v102
    %v106 = vadd.f32 %v88, %v104
    %v107 = vadd.f32 %v89, %v105
    %108 = vrot.lane.b32.xlu0 %v15, 108
    %v109 = vpop.permute.xlu0 %108
    %110 = vrot.lane.b32.xlu0 %v16, 108
    %v111 = vpop.permute.xlu0 %110
    %112 = vrot.lane.b32.xlu0 %v17, 108
    %v113 = vpop.permute.xlu0 %112
    %vm114 = vcmp.lt.s32.totalorder %v41, 108
    %v115 = vsel %vm114, %v111, %v113
    %v116 = vsel %vm114, %v109, %v111
    %118 = vset.pattern.permute.xlu0 0
    %119 = vperm.xlu0 %118, %v23
    %v120 = vpop.permute.xlu0 %119
    %v122 = vmul.f32 %v116, %v120
    %v123 = vmul.f32 %v115, %v120
    %v124 = vadd.f32 %v106, %v122
    %v125 = vadd.f32 %v107, %v123
    %126 = vrot.lane.b32.xlu0 %v15, 92
    %v127 = vpop.permute.xlu0 %126
    %128 = vrot.lane.b32.xlu0 %v16, 92
    %v129 = vpop.permute.xlu0 %128
    %130 = vrot.lane.b32.xlu0 %v17, 92
    %v131 = vpop.permute.xlu0 %130
    %vm132 = vcmp.lt.s32.totalorder %v41, 92
    %v133 = vsel %vm132, %v129, %v131
    %v134 = vsel %vm132, %v127, %v129
    %136 = vset.pattern.permute.xlu0 0
    %137 = vperm.xlu0 %136, %v24
    %v138 = vpop.permute.xlu0 %137
    %v140 = vmul.f32 %v134, %v138
    %v141 = vmul.f32 %v133, %v138
    %v142 = vadd.f32 %v124, %v140
    %v143 = vadd.f32 %v125, %v141
    %144 = vrot.lane.b32.xlu0 %v15, 91
    %v145 = vpop.permute.xlu0 %144
    %146 = vrot.lane.b32.xlu0 %v16, 91
    %v147 = vpop.permute.xlu0 %146
    %148 = vrot.lane.b32.xlu0 %v17, 91
    %v149 = vpop.permute.xlu0 %148
    %vm150 = vcmp.lt.s32.totalorder %v41, 91
    %v151 = vsel %vm150, %v147, %v149
    %v152 = vsel %vm150, %v145, %v147
    %154 = vset.pattern.permute.xlu0 0
    %155 = vperm.xlu0 %154, %v25
    %v156 = vpop.permute.xlu0 %155
    %v158 = vmul.f32 %v152, %v156
    %v159 = vmul.f32 %v151, %v156
    %v160 = vadd.f32 %v142, %v158
    %v161 = vadd.f32 %v143, %v159
    %162 = vrot.lane.b32.xlu0 %v15, 90
    %v163 = vpop.permute.xlu0 %162
    %164 = vrot.lane.b32.xlu0 %v16, 90
    %v165 = vpop.permute.xlu0 %164
    %166 = vrot.lane.b32.xlu0 %v17, 90
    %v167 = vpop.permute.xlu0 %166
    %vm168 = vcmp.lt.s32.totalorder %v41, 90
    %v169 = vsel %vm168, %v165, %v167
    %v170 = vsel %vm168, %v163, %v165
    %172 = vset.pattern.permute.xlu0 0
    %173 = vperm.xlu0 %172, %v26
    %v174 = vpop.permute.xlu0 %173
    %v176 = vmul.f32 %v170, %v174
    %v177 = vmul.f32 %v169, %v174
    %v178 = vadd.f32 %v160, %v176
    %v179 = vadd.f32 %v161, %v177
    %v180 = vld [vmem:[%s1] sm:$0xff]
    %182 = vset.pattern.permute.xlu0 0
    %183 = vperm.xlu0 %182, %v180
    %v184 = vpop.permute.xlu0 %183
    %v186 = vlaneseq
    %v187 = vshrl.u32 %v186, 7
    %v188 = vsub.s32 0, %v187
    %v189 = vrot.slane %v178, %v188
    %v190 = vlaneseq
    %v191 = vshrl.u32 %v190, 7
    %v192 = vsub.s32 0, %v191
    %v193 = vrot.slane %v179, %v192
    %v194 = vmul.f32 %v184, %v189
    %v195 = vmul.f32 %v184, %v193
    %196 = vset.pattern.permute.xlu0 1
    %197 = vperm.xlu0 %196, %v180
    %v198 = vpop.permute.xlu0 %197
    %v200 = vlaneseq
    %v201 = vshrl.u32 %v200, 7
    %v202 = vsub.s32 1, %v201
    %v203 = vrot.slane %v178, %v202
    %v204 = vlaneseq
    %v205 = vshrl.u32 %v204, 7
    %v206 = vsub.s32 1, %v205
    %v207 = vrot.slane %v179, %v206
    %v208 = vmul.f32 %v198, %v203
    %v209 = vmul.f32 %v198, %v207
    %v210 = vadd.f32 %v194, %v208
    %v211 = vadd.f32 %v195, %v209
    %212 = vset.pattern.permute.xlu0 2
    %213 = vperm.xlu0 %212, %v180
    %v214 = vpop.permute.xlu0 %213
    %v216 = vlaneseq
    %v217 = vshrl.u32 %v216, 7
    %v218 = vsub.s32 2, %v217
    %v219 = vrot.slane %v178, %v218
    %v220 = vlaneseq
    %v221 = vshrl.u32 %v220, 7
    %v222 = vsub.s32 2, %v221
    %v223 = vrot.slane %v179, %v222
    %v224 = vmul.f32 %v214, %v219
    %v225 = vmul.f32 %v214, %v223
    %v226 = vadd.f32 %v210, %v224
    %v227 = vadd.f32 %v211, %v225
    %228 = vset.pattern.permute.xlu0 3
    %229 = vperm.xlu0 %228, %v180
    %v230 = vpop.permute.xlu0 %229
    %v232 = vlaneseq
    %v233 = vshrl.u32 %v232, 7
    %v234 = vsub.s32 3, %v233
    %v235 = vrot.slane %v178, %v234
    %v236 = vlaneseq
    %v237 = vshrl.u32 %v236, 7
    %v238 = vsub.s32 3, %v237
    %v239 = vrot.slane %v179, %v238
    %v240 = vmul.f32 %v230, %v235
    %v241 = vmul.f32 %v230, %v239
    %v242 = vadd.f32 %v226, %v240
    %v243 = vadd.f32 %v227, %v241
    %v244 = vlaneseq
    %v245 = vshrl.u32 %v244, 7
    %v246 = vsub.s32 4, %v245
    %v247 = vrot.slane %v178, %v246
    %v248 = vlaneseq
    %v249 = vshrl.u32 %v248, 7
    %v250 = vsub.s32 4, %v249
    %v251 = vrot.slane %v179, %v250
    %v252 = vmul.f32 %v184, %v247
    %v253 = vmul.f32 %v184, %v251
    %v254 = vlaneseq
    %v255 = vshrl.u32 %v254, 7
    %v256 = vsub.s32 5, %v255
    %v257 = vrot.slane %v178, %v256
    %v258 = vlaneseq
    %v259 = vshrl.u32 %v258, 7
    %v260 = vsub.s32 5, %v259
    %v261 = vrot.slane %v179, %v260
    %v262 = vmul.f32 %v198, %v257
    %v263 = vmul.f32 %v198, %v261
    %v264 = vadd.f32 %v252, %v262
    %v265 = vadd.f32 %v253, %v263
    %v266 = vlaneseq
    %v267 = vshrl.u32 %v266, 7
    %v268 = vsub.s32 6, %v267
    %v269 = vrot.slane %v178, %v268
    %v270 = vlaneseq
    %v271 = vshrl.u32 %v270, 7
    %v272 = vsub.s32 6, %v271
    %v273 = vrot.slane %v179, %v272
    %v274 = vmul.f32 %v214, %v269
    %v275 = vmul.f32 %v214, %v273
    %v276 = vadd.f32 %v264, %v274
    %v277 = vadd.f32 %v265, %v275
    %v278 = vlaneseq
    %v279 = vshrl.u32 %v278, 7
    %v280 = vsub.s32 7, %v279
    %v281 = vrot.slane %v178, %v280
    %v282 = vlaneseq
    %v283 = vshrl.u32 %v282, 7
    %v284 = vsub.s32 7, %v283
    %v285 = vrot.slane %v179, %v284
    %v286 = vmul.f32 %v230, %v281
    %v287 = vmul.f32 %v230, %v285
    %v288 = vadd.f32 %v276, %v286
    %v289 = vadd.f32 %v277, %v287
    %290 = vst [vmem:[#allocation2] sm:$0xff] %v242
    %291 = vst [vmem:[#allocation2 + $0x8] sm:$0xff] %v243
    %292 = vst [vmem:[#allocation2 + $0x10] sm:$0xff] %v288
    %293 = vst [vmem:[#allocation2 + $0x18] sm:$0xff] %v289
    // Predicated region
    $region14: #{tpu_custom_call.1} parent=1 // pred_check
      _
    $region15: #{tpu_custom_call.1} parent=1 // pred_check_branch
      %295 = sbr.rel (0) target = $region17
    $region16: #{tpu_custom_call.1} parent=1 // pred_region
      %s297 = ssub.s32 512, 512
      %298 = vsyncadd [#allocation3], %s297
      %s299 = sshll.u32 [#allocation2], 4
      %s300 = int_to_ptr.vmem [resolvable:$true] %s299
      %305 = dma.vmem_to_hbm [thread:$0]  %s300, 512, %s3, [#allocation3], 256, 256, 16
    $region17: #{tpu_custom_call.1} parent=1 // pred_fallthru
      _
    // Predicated region
    $region18: #{tpu_custom_call.1} parent=1 // pred_check
      _
    $region19: #{tpu_custom_call.1} parent=1 // pred_check_branch
      %307 = sbr.rel (0) target = $region21
    $region20: #{tpu_custom_call.1} parent=1 // pred_region
      %308 = dma.done [#allocation3], 512
    $region21: #{tpu_custom_call.1} parent=1 // pred_fallthru
      _
    %309 = vsyncpa [#allocation3], 1

</llo_original>
